<compile_context>
chip_gen: v7x
topology: tpu7x:2x2x1
jax: 0.10.0
libtpu: 0.0.40
codegen_flags: <defaults>
</compile_context>

<pallas_src>
import functools

import jax
import jax.numpy as jnp
from jax import lax
from jax.experimental import pallas as pl
from jax.experimental.pallas import tpu as pltpu


def _temporal_block_kernel(*refs, K, dilation, pad, ltile, nb, has_downsample,
                           compute_dtype):
    """One (batch-group, L-tile) grid step.

    refs (has_downsample=True):
      x_ref    (Nb, Cin, Ltile)      current input tiles (NCL, time on lanes)
      w1_ref   (Cout, K*Cin)         conv1 weights, taps fused on contraction
      b1_ref   (Cout, 1)
      w2_ref   (Cout, K*Cout)
      b2_ref   (Cout, 1)
      wd_ref   (Cout, Cin)           1x1 downsample weights [iff has_downsample]
      bd_ref   (Cout, 1)                                    [iff has_downsample]
      o_ref    (Nb, Cout, Ltile)     output tiles
      xext_ref (Nb, Cin, pad+Ltile)  VMEM: carry(pad) | current x tile
      hext_ref (Nb, Cout, pad+Ltile) VMEM: carry(pad) | current h1 tile (f32)
    """
    if has_downsample:
        (x_ref, w1_ref, b1_ref, w2_ref, b2_ref, wd_ref, bd_ref, o_ref,
         xext_ref, hext_ref) = refs
    else:
        (x_ref, w1_ref, b1_ref, w2_ref, b2_ref, o_ref,
         xext_ref, hext_ref) = refs

    d = dilation
    cdt = compute_dtype
    lt = pl.program_id(1)

    if pad > 0:
        # Causal left zero-padding: reset the carry region at the start of
        # each batch group; later tiles reuse the carried tails instead.
        @pl.when(lt == 0)
        def _():
            xext_ref[:, :, 0:pad] = jnp.zeros(
                xext_ref.shape[:2] + (pad,), xext_ref.dtype)
            hext_ref[:, :, 0:pad] = jnp.zeros(
                hext_ref.shape[:2] + (pad,), hext_ref.dtype)

    # Place the current tiles next to the carry.
    xext_ref[:, :, pad:pad + ltile] = x_ref[...]

    # ---- conv1 (causal dilated): taps gathered in registers, one matmul ---
    taps1 = jnp.concatenate(
        [jnp.concatenate(
            [xext_ref[b, :, k * d:k * d + ltile] for k in range(K)], axis=0)
         for b in range(nb)], axis=1)                   # (K*Cin, Nb*Ltile)
    acc1 = jnp.dot(w1_ref[...], taps1.astype(cdt),
                   preferred_element_type=jnp.float32)  # (Cout, Nb*Ltile) f32
    h1 = jnp.tanh(acc1 + b1_ref[...])                   # kept in f32
    # dropout1: identity at inference

    for b in range(nb):
        hext_ref[b, :, pad:pad + ltile] = h1[:, b * ltile:(b + 1) * ltile]

    # ---- conv2 (causal dilated): same fused-tap matmul ---------------------
    taps2 = jnp.concatenate(
        [jnp.concatenate(
            [hext_ref[b, :, k * d:k * d + ltile] for k in range(K)], axis=0)
         for b in range(nb)], axis=1)                   # (K*Cout, Nb*Ltile)
    acc2 = jnp.dot(w2_ref[...], taps2.astype(cdt),
                   preferred_element_type=jnp.float32)
    h2 = jnp.tanh(acc2 + b2_ref[...])
    # dropout2: identity at inference

    # ---- residual (1x1 downsample conv iff Cin != Cout) + final tanh -------
    x_lanes = jnp.concatenate([x_ref[b, :, :] for b in range(nb)], axis=1)
    if has_downsample:
        res = jnp.dot(wd_ref[...], x_lanes.astype(cdt),
                      preferred_element_type=jnp.float32) + bd_ref[...]
    else:
        res = x_lanes.astype(jnp.float32)
    y = jnp.tanh(h2 + res)                              # (Cout, Nb*Ltile) f32
    for b in range(nb):
        o_ref[b, :, :] = y[:, b * ltile:(b + 1) * ltile].astype(o_ref.dtype)

    if pad > 0:
        # Carry the last `pad` time-columns of x and h1 into the next tile.
        xext_ref[:, :, 0:pad] = xext_ref[:, :, ltile:ltile + pad]
        hext_ref[:, :, 0:pad] = hext_ref[:, :, ltile:ltile + pad]


def _choose_ltile(L, target):
    """Pick a lane-dense time-tile width.

    If L fits in one tile use L.  Otherwise prefer the largest multiple of
    128 <= target dividing L (no masked tail); else fall back to the largest
    multiple of 128 <= target with a cdiv grid + masked tail.
    """
    if L <= target:
        return L
    t = max(128, (target // 128) * 128)
    for cand in range(t, 127, -128):
        if L % cand == 0:
            return cand
    return t


def _choose_nb(N, ltile, lane_target):
    """Fold batch elements onto the lane axis when the time tile is narrow."""
    max_nb = max(1, lane_target // max(ltile, 1))
    max_nb = min(max_nb, N)
    for cand in range(max_nb, 0, -1):
        if N % cand == 0:
            return cand
    return 1


def _round_up(v, m):
    return -(-v // m) * m


def _padded_tile_bytes(shape, dtype):
    """Rough VMEM footprint of a buffer, rounded to native (sublane,128) tiles."""
    itemsize = jnp.dtype(dtype).itemsize
    sub = 8 * max(1, 4 // itemsize)           # 8 rows f32, 16 bf16, ...
    rows, cols = shape[-2], shape[-1]
    lead = 1
    for s in shape[:-2]:
        lead *= int(s)
    return lead * _round_up(int(rows), sub) * _round_up(int(cols), 128) * itemsize


def _vmem_cap_bytes():
    """Generation-aware VMEM budget: ~75% of physical per-core VMEM (leaves
    headroom for Mosaic internal scratch), additionally capped at 100 MiB."""
    cap = None
    try:
        info = pltpu.get_tpu_info()
        for name in ("vmem_capacity_bytes", "vmem_bytes", "vmem_size_bytes"):
            v = getattr(info, name, None)
            if v:
                cap = int(v)
                break
    except Exception:
        cap = None
    if cap is None:
        cap = 64 << 20                        # conservative (v7x physical VMEM)
    return min(int(cap * 3 // 4), 100 << 20)


def temporal_block(x, w1, b1, w2, b2, wd=None, bd=None, *, kernel_size,
                   dilation, compute_dtype=jnp.bfloat16, out_dtype=jnp.float32,
                   ltile_target=2048, lane_target=2048):
    """TemporalBlock forward (eval mode).

    x:  (N, Cin, L) in PyTorch NCL layout (any float dtype; cast in-kernel).
    w1: (Cout, Cin, K), w2: (Cout, Cout, K)  (PyTorch Conv1d weight layout).
    b1, b2: (Cout,).  wd: (Cout, Cin), bd: (Cout,)  (required iff Cin != Cout).
    Returns (N, Cout, L) in `out_dtype`.
    """
    N, Cin, L = x.shape
    K = kernel_size
    Cout = w1.shape[0]
    pad = (K - 1) * dilation
    has_ds = Cin != Cout
    if has_ds and (wd is None or bd is None):
        raise ValueError("downsample weights required when Cin != Cout")

    ltile = _choose_ltile(L, ltile_target)
    n_lt = pl.cdiv(L, ltile)
    nb = _choose_nb(N, ltile, lane_target)
    cdt = jnp.dtype(compute_dtype)
    odt = jnp.dtype(out_dtype)

    # Weights in the compute dtype (tiny arrays; cast once in the wrapper).
    # x is NOT cast in the wrapper (that would be a separate HBM pass).
    w1f = jnp.transpose(w1, (0, 2, 1)).reshape(Cout, K * Cin).astype(cdt)
    w2f = jnp.transpose(w2, (0, 2, 1)).reshape(Cout, K * Cout).astype(cdt)
    b1c = b1.reshape(Cout, 1).astype(jnp.float32)
    b2c = b2.reshape(Cout, 1).astype(jnp.float32)

    args = [x, w1f, b1c, w2f, b2c]
    in_specs = [
        pl.BlockSpec((nb, Cin, ltile), lambda n, t: (n, 0, t)),        # x tiles
        pl.BlockSpec((Cout, K * Cin), lambda n, t: (0, 0)),            # w1
        pl.BlockSpec((Cout, 1), lambda n, t: (0, 0)),                  # b1
        pl.BlockSpec((Cout, K * Cout), lambda n, t: (0, 0)),           # w2
        pl.BlockSpec((Cout, 1), lambda n, t: (0, 0)),                  # b2
    ]
    if has_ds:  # don't DMA unused downsample weights when Cin == Cout
        wdc = wd.reshape(Cout, Cin).astype(cdt)
        bdc = bd.reshape(Cout, 1).astype(jnp.float32)
        args += [wdc, bdc]
        in_specs += [pl.BlockSpec((Cout, Cin), lambda n, t: (0, 0)),
                     pl.BlockSpec((Cout, 1), lambda n, t: (0, 0))]

    scratch_shapes = [
        pltpu.VMEM((nb, Cin, pad + ltile), x.dtype),       # x carry + tile
        pltpu.VMEM((nb, Cout, pad + ltile), jnp.float32),  # h1 carry + tile (f32)
    ]

    # Explicit VMEM budget with headroom, capped per-generation.
    est = 2 * _padded_tile_bytes((nb, Cin, ltile), x.dtype)       # x, dbl-buffered
    est += 2 * _padded_tile_bytes((nb, Cout, ltile), odt)         # out, dbl-buffered
    est += 2 * _padded_tile_bytes((Cout, K * Cin), cdt)
    est += 2 * _padded_tile_bytes((Cout, K * Cout), cdt)
    est += 4 * _padded_tile_bytes((Cout, 1), jnp.float32)
    if has_ds:
        est += 2 * _padded_tile_bytes((Cout, Cin), cdt)
        est += 2 * _padded_tile_bytes((Cout, 1), jnp.float32)
    est += _padded_tile_bytes((nb, Cin, pad + ltile), x.dtype)    # xext scratch
    est += _padded_tile_bytes((nb, Cout, pad + ltile), jnp.float32)
    est += _padded_tile_bytes((K * Cin, nb * ltile), cdt)         # live tap values
    est += _padded_tile_bytes((K * Cout, nb * ltile), cdt)
    est += 4 * _padded_tile_bytes((Cout, nb * ltile), jnp.float32)
    vmem_limit = int(min(max(int(1.5 * est), 8 << 20), _vmem_cap_bytes()))

    kernel = functools.partial(
        _temporal_block_kernel, K=K, dilation=dilation, pad=pad,
        ltile=ltile, nb=nb, has_downsample=has_ds, compute_dtype=cdt)

    return pl.pallas_call(
        kernel,
        out_shape=jax.ShapeDtypeStruct((N, Cout, L), odt),
        grid=(N // nb, n_lt),
        in_specs=in_specs,
        out_specs=pl.BlockSpec((nb, Cout, ltile), lambda n, t: (n, 0, t)),
        scratch_shapes=scratch_shapes,
        compiler_params=pltpu.CompilerParams(
            # batch groups are independent -> shardable across TensorCores;
            # the L axis carries causal state -> sequential (must stay innermost).
            dimension_semantics=("parallel", "arbitrary"),
            vmem_limit_bytes=vmem_limit),
    )(*args)


# ----------------------- pure-JAX reference ------------------------------
def _conv1d_ncl(x, w_torch, b, dilation, pad):
    out = lax.conv_general_dilated(
        x, w_torch, window_strides=(1,), padding=[(pad, pad)],
        rhs_dilation=(dilation,), dimension_numbers=("NCH", "OIH", "NCH"))
    return out + b[None, :, None]


def temporal_block_reference(x, w1, b1, w2, b2, wd=None, bd=None, *,
                             kernel_size, dilation):
    L = x.shape[-1]
    pad = (kernel_size - 1) * dilation
    h = jnp.tanh(_conv1d_ncl(x, w1, b1, dilation, pad)[:, :, :L])
    h = jnp.tanh(_conv1d_ncl(h, w2, b2, dilation, pad)[:, :, :L])
    if wd is None:
        res = x
    else:
        res = jnp.einsum("ncl,oc->nol", x, wd) + bd[None, :, None]
    return jnp.tanh(h + res)


if __name__ == "__main__":
    key = jax.random.PRNGKey(0)
    N, Cin, Cout = 2, 4, 32
    K, dilation = 3, 2

    ks = jax.random.split(key, 12)
    w1 = 0.1 * jax.random.normal(ks[1], (Cout, Cin, K), jnp.float32)
    b1 = 0.1 * jax.random.normal(ks[2], (Cout,), jnp.float32)
    w2 = 0.1 * jax.random.normal(ks[3], (Cout, Cout, K), jnp.float32)
    b2 = 0.1 * jax.random.normal(ks[4], (Cout,), jnp.float32)
    wd = 0.1 * jax.random.normal(ks[5], (Cout, Cin), jnp.float32)
    bd = 0.1 * jax.random.normal(ks[6], (Cout,), jnp.float32)

    # --- 1) small single-tile case; batch folded onto lanes (Nb=2) --------
    L = 16
    x = jax.random.normal(ks[0], (N, Cin, L), jnp.float32)
    ref = temporal_block_reference(x, w1, b1, w2, b2, wd, bd,
                                   kernel_size=K, dilation=dilation)

    out_f32 = temporal_block(x, w1, b1, w2, b2, wd, bd, kernel_size=K,
                             dilation=dilation, compute_dtype=jnp.float32)
    out_f32 = jax.block_until_ready(out_f32)
    assert out_f32.shape == (N, Cout, L)
    err = float(jnp.max(jnp.abs(out_f32 - ref)))
    assert err < 1e-4, f"f32 max abs error {err}"

    # --- 2) bf16 MXU inputs (default), f32 output --------------------------
    out_bf16 = temporal_block(x, w1, b1, w2, b2, wd, bd, kernel_size=K,
                              dilation=dilation)
    out_bf16 = jax.block_until_ready(out_bf16)
    err = float(jnp.max(jnp.abs(out_bf16 - ref)))
    assert err < 3e-2, f"bf16 max abs error {err}"

    # --- 3) bf16 output writeback (halves output HBM traffic) --------------
    out_b16o = temporal_block(x, w1, b1, w2, b2, wd, bd, kernel_size=K,
                              dilation=dilation, out_dtype=jnp.bfloat16)
    out_b16o = jax.block_until_ready(out_b16o)
    assert out_b16o.dtype == jnp.bfloat16
    err = float(jnp.max(jnp.abs(out_b16o.astype(jnp.float32) - ref)))
    assert err < 3e-2, f"bf16-out max abs error {err}"

    # --- 4) multi-tile: exercises the causal carry across L tiles ----------
    L2 = 256
    x2 = jax.random.normal(ks[7], (N, Cin, L2), jnp.float32)
    ref2 = temporal_block_reference(x2, w1, b1, w2, b2, wd, bd,
                                    kernel_size=K, dilation=dilation)
    out2 = temporal_block(x2, w1, b1, w2, b2, wd, bd, kernel_size=K,
                          dilation=dilation, compute_dtype=jnp.float32,
                          ltile_target=128)                 # 2 tiles of 128
    out2 = jax.block_until_ready(out2)
    err = float(jnp.max(jnp.abs(out2 - ref2)))
    assert err < 1e-4, f"tiled f32 max abs error {err}"

    # --- 5) ragged L (not a tile multiple): cdiv grid + masked tail --------
    L3 = 200
    x3 = jax.random.normal(ks[8], (N, Cin, L3), jnp.float32)
    ref3 = temporal_block_reference(x3, w1, b1, w2, b2, wd, bd,
                                    kernel_size=K, dilation=dilation)
    out3 = temporal_block(x3, w1, b1, w2, b2, wd, bd, kernel_size=K,
                          dilation=dilation, compute_dtype=jnp.float32,
                          ltile_target=128)
    out3 = jax.block_until_ready(out3)
    err = float(jnp.max(jnp.abs(out3 - ref3)))
    assert err < 1e-4, f"ragged f32 max abs error {err}"

    # --- 6) identity-residual path (Cin == Cout, no downsample conv) -------
    Cs = 32
    w1s = 0.1 * jax.random.normal(ks[9], (Cs, Cs, K), jnp.float32)
    w2s = 0.1 * jax.random.normal(ks[10], (Cs, Cs, K), jnp.float32)
    x4 = jax.random.normal(ks[11], (N, Cs, L), jnp.float32)
    ref4 = temporal_block_reference(x4, w1s, b1, w2s, b2,
                                    kernel_size=K, dilation=dilation)
    out4 = temporal_block(x4, w1s, b1, w2s, b2, kernel_size=K,
                          dilation=dilation, compute_dtype=jnp.float32)
    out4 = jax.block_until_ready(out4)
    err = float(jnp.max(jnp.abs(out4 - ref4)))
    assert err < 1e-4, f"identity-residual f32 max abs error {err}"

    print("KERNEL_OK")
</pallas_src>

<mosaic_0001>
module attributes {stable_mosaic.version = 11 : i64} {
  func.func @_temporal_block_kernel(%arg0: i32, %arg1: i32, %arg2: memref<2x4x16xf32, #tpu.memory_space<vmem>>, %arg3: memref<32x12xf32, #tpu.memory_space<vmem>>, %arg4: memref<32x1xf32, #tpu.memory_space<vmem>>, %arg5: memref<32x96xf32, #tpu.memory_space<vmem>>, %arg6: memref<32x1xf32, #tpu.memory_space<vmem>>, %arg7: memref<32x4xf32, #tpu.memory_space<vmem>>, %arg8: memref<32x1xf32, #tpu.memory_space<vmem>>, %arg9: memref<2x32x16xf32, #tpu.memory_space<vmem>>, %arg10: memref<2x4x20xf32, #tpu.memory_space<vmem>>, %arg11: memref<2x32x20xf32, #tpu.memory_space<vmem>>) attributes {dimension_semantics = [#tpu.dimension_semantics<parallel>, #tpu.dimension_semantics<arbitrary>], iteration_bounds = array<i64: 1, 1>, scalar_prefetch = 0 : i64, scratch_operands = 2 : i64, tpu.core_type = #tpu.core_type<tc>, window_params = [{transform_indices = @transform_0, window_bounds = array<i64: 2, 4, 16>}, {pipeline_mode = #tpu.pipeline_mode<synchronous>, transform_indices = @transform_1, window_bounds = array<i64: 32, 12>}, {pipeline_mode = #tpu.pipeline_mode<synchronous>, transform_indices = @transform_2, window_bounds = array<i64: 32, 1>}, {pipeline_mode = #tpu.pipeline_mode<synchronous>, transform_indices = @transform_3, window_bounds = array<i64: 32, 96>}, {pipeline_mode = #tpu.pipeline_mode<synchronous>, transform_indices = @transform_4, window_bounds = array<i64: 32, 1>}, {pipeline_mode = #tpu.pipeline_mode<synchronous>, transform_indices = @transform_5, window_bounds = array<i64: 32, 4>}, {pipeline_mode = #tpu.pipeline_mode<synchronous>, transform_indices = @transform_6, window_bounds = array<i64: 32, 1>}, {transform_indices = @transform_7, window_bounds = array<i64: 2, 32, 16>}]} {
    %c0_i32 = arith.constant 0 : i32
    %0 = arith.cmpi eq, %arg1, %c0_i32 : i32
    %1 = arith.extui %0 : i1 to i32
    %c0_i32_0 = arith.constant 0 : i32
    %2 = arith.cmpi ne, %1, %c0_i32_0 : i32
    scf.if %2 {
      %cst_82 = arith.constant 0.000000e+00 : f32
      %79 = vector.broadcast %cst_82 : f32 to vector<2x4x4xf32>
      %c0_83 = arith.constant 0 : index
      %c0_84 = arith.constant 0 : index
      %c0_85 = arith.constant 0 : index
      %80 = vector.load %arg10[%c0_83, %c0_84, %c0_85] : memref<2x4x20xf32, #tpu.memory_space<vmem>>, vector<2x4x4xf32>
      tpu.vector_store %arg10[%c0_83, %c0_84, %c0_85], %79 {strides = array<i32>} : memref<2x4x20xf32, #tpu.memory_space<vmem>>, vector<2x4x4xf32>,
      %cst_86 = arith.constant 0.000000e+00 : f32
      %81 = vector.broadcast %cst_86 : f32 to vector<2x32x4xf32>
      %c0_87 = arith.constant 0 : index
      %c0_88 = arith.constant 0 : index
      %c0_89 = arith.constant 0 : index
      %82 = vector.load %arg11[%c0_87, %c0_88, %c0_89] : memref<2x32x20xf32, #tpu.memory_space<vmem>>, vector<2x32x4xf32>
      tpu.vector_store %arg11[%c0_87, %c0_88, %c0_89], %81 {strides = array<i32>} : memref<2x32x20xf32, #tpu.memory_space<vmem>>, vector<2x32x4xf32>,
    } else {
    }
    %c0 = arith.constant 0 : index
    %c0_1 = arith.constant 0 : index
    %c0_2 = arith.constant 0 : index
    %3 = vector.load %arg2[%c0, %c0_1, %c0_2] : memref<2x4x16xf32, #tpu.memory_space<vmem>>, vector<2x4x16xf32>
    %c0_3 = arith.constant 0 : index
    %c0_4 = arith.constant 0 : index
    %c4 = arith.constant 4 : index
    %4 = vector.load %arg10[%c0_3, %c0_4, %c4] : memref<2x4x20xf32, #tpu.memory_space<vmem>>, vector<2x4x16xf32>
    tpu.vector_store %arg10[%c0_3, %c0_4, %c4], %3 {strides = array<i32>} : memref<2x4x20xf32, #tpu.memory_space<vmem>>, vector<2x4x16xf32>,
    %c0_5 = arith.constant 0 : index
    %c0_6 = arith.constant 0 : index
    %c0_7 = arith.constant 0 : index
    %5 = vector.load %arg10[%c0_5, %c0_6, %c0_7] : memref<2x4x20xf32, #tpu.memory_space<vmem>>, vector<1x4x16xf32>
    %6 = vector.shape_cast %5 : vector<1x4x16xf32> to vector<4x16xf32>
    %c0_8 = arith.constant 0 : index
    %c0_9 = arith.constant 0 : index
    %c2 = arith.constant 2 : index
    %7 = vector.load %arg10[%c0_8, %c0_9, %c2] : memref<2x4x20xf32, #tpu.memory_space<vmem>>, vector<1x4x16xf32>
    %8 = vector.shape_cast %7 : vector<1x4x16xf32> to vector<4x16xf32>
    %c0_10 = arith.constant 0 : index
    %c0_11 = arith.constant 0 : index
    %c4_12 = arith.constant 4 : index
    %9 = vector.load %arg10[%c0_10, %c0_11, %c4_12] : memref<2x4x20xf32, #tpu.memory_space<vmem>>, vector<1x4x16xf32>
    %10 = vector.shape_cast %9 : vector<1x4x16xf32> to vector<4x16xf32>
    %11 = tpu.concatenate %6, %8, %10 in 0 : vector<4x16xf32>, vector<4x16xf32>, vector<4x16xf32> -> vector<12x16xf32>
    %c1 = arith.constant 1 : index
    %c0_13 = arith.constant 0 : index
    %c0_14 = arith.constant 0 : index
    %12 = vector.load %arg10[%c1, %c0_13, %c0_14] : memref<2x4x20xf32, #tpu.memory_space<vmem>>, vector<1x4x16xf32>
    %13 = vector.shape_cast %12 : vector<1x4x16xf32> to vector<4x16xf32>
    %c1_15 = arith.constant 1 : index
    %c0_16 = arith.constant 0 : index
    %c2_17 = arith.constant 2 : index
    %14 = vector.load %arg10[%c1_15, %c0_16, %c2_17] : memref<2x4x20xf32, #tpu.memory_space<vmem>>, vector<1x4x16xf32>
    %15 = vector.shape_cast %14 : vector<1x4x16xf32> to vector<4x16xf32>
    %c1_18 = arith.constant 1 : index
    %c0_19 = arith.constant 0 : index
    %c4_20 = arith.constant 4 : index
    %16 = vector.load %arg10[%c1_18, %c0_19, %c4_20] : memref<2x4x20xf32, #tpu.memory_space<vmem>>, vector<1x4x16xf32>
    %17 = vector.shape_cast %16 : vector<1x4x16xf32> to vector<4x16xf32>
    %18 = tpu.concatenate %13, %15, %17 in 0 : vector<4x16xf32>, vector<4x16xf32>, vector<4x16xf32> -> vector<12x16xf32>
    %19 = tpu.concatenate %11, %18 in 1 : vector<12x16xf32>, vector<12x16xf32> -> vector<12x32xf32>
    %c0_21 = arith.constant 0 : index
    %c0_22 = arith.constant 0 : index
    %20 = vector.load %arg3[%c0_21, %c0_22] : memref<32x12xf32, #tpu.memory_space<vmem>>, vector<32x12xf32>
    %cst = arith.constant dense<0.000000e+00> : vector<32x32xf32>
    %21 = tpu.matmul %20, %19, %cst {dimension_numbers = #tpu.dot_dimension_numbers<[1], [0], [0], [1], [0, 0, 1, 1], [], []>} : vector<32x12xf32>, vector<12x32xf32>, vector<32x32xf32> -> vector<32x32xf32>
    %c0_23 = arith.constant 0 : index
    %c0_24 = arith.constant 0 : index
    %22 = vector.load %arg4[%c0_23, %c0_24] : memref<32x1xf32, #tpu.memory_space<vmem>>, vector<32x1xf32>
    %23 = vector.broadcast %22 : vector<32x1xf32> to vector<32x32xf32>
    %24 = arith.addf %21, %23 : vector<32x32xf32>
    %25 = math.tanh %24 : vector<32x32xf32>
    %26 = vector.extract_strided_slice %25 {offsets = [0, 0], sizes = [32, 16], strides = [1, 1]} : vector<32x32xf32> to vector<32x16xf32>
    %c0_25 = arith.constant 0 : index
    %c0_26 = arith.constant 0 : index
    %c4_27 = arith.constant 4 : index
    %27 = vector.load %arg11[%c0_25, %c0_26, %c4_27] : memref<2x32x20xf32, #tpu.memory_space<vmem>>, vector<1x32x16xf32>
    %28 = vector.shape_cast %27 : vector<1x32x16xf32> to vector<32x16xf32>
    %29 = vector.shape_cast %26 : vector<32x16xf32> to vector<1x32x16xf32>
    tpu.vector_store %arg11[%c0_25, %c0_26, %c4_27], %29 {strides = array<i32>} : memref<2x32x20xf32, #tpu.memory_space<vmem>>, vector<1x32x16xf32>,
    %30 = vector.extract_strided_slice %25 {offsets = [0, 16], sizes = [32, 16], strides = [1, 1]} : vector<32x32xf32> to vector<32x16xf32>
    %c1_28 = arith.constant 1 : index
    %c0_29 = arith.constant 0 : index
    %c4_30 = arith.constant 4 : index
    %31 = vector.load %arg11[%c1_28, %c0_29, %c4_30] : memref<2x32x20xf32, #tpu.memory_space<vmem>>, vector<1x32x16xf32>
    %32 = vector.shape_cast %31 : vector<1x32x16xf32> to vector<32x16xf32>
    %33 = vector.shape_cast %30 : vector<32x16xf32> to vector<1x32x16xf32>
    tpu.vector_store %arg11[%c1_28, %c0_29, %c4_30], %33 {strides = array<i32>} : memref<2x32x20xf32, #tpu.memory_space<vmem>>, vector<1x32x16xf32>,
    %c0_31 = arith.constant 0 : index
    %c0_32 = arith.constant 0 : index
    %c0_33 = arith.constant 0 : index
    %34 = vector.load %arg11[%c0_31, %c0_32, %c0_33] : memref<2x32x20xf32, #tpu.memory_space<vmem>>, vector<1x32x16xf32>
    %35 = vector.shape_cast %34 : vector<1x32x16xf32> to vector<32x16xf32>
    %c0_34 = arith.constant 0 : index
    %c0_35 = arith.constant 0 : index
    %c2_36 = arith.constant 2 : index
    %36 = vector.load %arg11[%c0_34, %c0_35, %c2_36] : memref<2x32x20xf32, #tpu.memory_space<vmem>>, vector<1x32x16xf32>
    %37 = vector.shape_cast %36 : vector<1x32x16xf32> to vector<32x16xf32>
    %c0_37 = arith.constant 0 : index
    %c0_38 = arith.constant 0 : index
    %c4_39 = arith.constant 4 : index
    %38 = vector.load %arg11[%c0_37, %c0_38, %c4_39] : memref<2x32x20xf32, #tpu.memory_space<vmem>>, vector<1x32x16xf32>
    %39 = vector.shape_cast %38 : vector<1x32x16xf32> to vector<32x16xf32>
    %40 = tpu.concatenate %35, %37, %39 in 0 : vector<32x16xf32>, vector<32x16xf32>, vector<32x16xf32> -> vector<96x16xf32>
    %c1_40 = arith.constant 1 : index
    %c0_41 = arith.constant 0 : index
    %c0_42 = arith.constant 0 : index
    %41 = vector.load %arg11[%c1_40, %c0_41, %c0_42] : memref<2x32x20xf32, #tpu.memory_space<vmem>>, vector<1x32x16xf32>
    %42 = vector.shape_cast %41 : vector<1x32x16xf32> to vector<32x16xf32>
    %c1_43 = arith.constant 1 : index
    %c0_44 = arith.constant 0 : index
    %c2_45 = arith.constant 2 : index
    %43 = vector.load %arg11[%c1_43, %c0_44, %c2_45] : memref<2x32x20xf32, #tpu.memory_space<vmem>>, vector<1x32x16xf32>
    %44 = vector.shape_cast %43 : vector<1x32x16xf32> to vector<32x16xf32>
    %c1_46 = arith.constant 1 : index
    %c0_47 = arith.constant 0 : index
    %c4_48 = arith.constant 4 : index
    %45 = vector.load %arg11[%c1_46, %c0_47, %c4_48] : memref<2x32x20xf32, #tpu.memory_space<vmem>>, vector<1x32x16xf32>
    %46 = vector.shape_cast %45 : vector<1x32x16xf32> to vector<32x16xf32>
    %47 = tpu.concatenate %42, %44, %46 in 0 : vector<32x16xf32>, vector<32x16xf32>, vector<32x16xf32> -> vector<96x16xf32>
    %48 = tpu.concatenate %40, %47 in 1 : vector<96x16xf32>, vector<96x16xf32> -> vector<96x32xf32>
    %c0_49 = arith.constant 0 : index
    %c0_50 = arith.constant 0 : index
    %49 = vector.load %arg5[%c0_49, %c0_50] : memref<32x96xf32, #tpu.memory_space<vmem>>, vector<32x96xf32>
    %cst_51 = arith.constant dense<0.000000e+00> : vector<32x32xf32>
    %50 = tpu.matmul %49, %48, %cst_51 {dimension_numbers = #tpu.dot_dimension_numbers<[1], [0], [0], [1], [0, 0, 1, 1], [], []>} : vector<32x96xf32>, vector<96x32xf32>, vector<32x32xf32> -> vector<32x32xf32>
    %c0_52 = arith.constant 0 : index
    %c0_53 = arith.constant 0 : index
    %51 = vector.load %arg6[%c0_52, %c0_53] : memref<32x1xf32, #tpu.memory_space<vmem>>, vector<32x1xf32>
    %52 = vector.broadcast %51 : vector<32x1xf32> to vector<32x32xf32>
    %53 = arith.addf %50, %52 : vector<32x32xf32>
    %54 = math.tanh %53 : vector<32x32xf32>
    %c0_54 = arith.constant 0 : index
    %c0_55 = arith.constant 0 : index
    %c0_56 = arith.constant 0 : index
    %55 = vector.load %arg2[%c0_54, %c0_55, %c0_56] : memref<2x4x16xf32, #tpu.memory_space<vmem>>, vector<1x4x16xf32>
    %56 = vector.shape_cast %55 : vector<1x4x16xf32> to vector<4x16xf32>
    %c1_57 = arith.constant 1 : index
    %c0_58 = arith.constant 0 : index
    %c0_59 = arith.constant 0 : index
    %57 = vector.load %arg2[%c1_57, %c0_58, %c0_59] : memref<2x4x16xf32, #tpu.memory_space<vmem>>, vector<1x4x16xf32>
    %58 = vector.shape_cast %57 : vector<1x4x16xf32> to vector<4x16xf32>
    %59 = tpu.concatenate %56, %58 in 1 : vector<4x16xf32>, vector<4x16xf32> -> vector<4x32xf32>
    %c0_60 = arith.constant 0 : index
    %c0_61 = arith.constant 0 : index
    %60 = vector.load %arg7[%c0_60, %c0_61] : memref<32x4xf32, #tpu.memory_space<vmem>>, vector<32x4xf32>
    %cst_62 = arith.constant dense<0.000000e+00> : vector<32x32xf32>
    %61 = tpu.matmul %60, %59, %cst_62 {dimension_numbers = #tpu.dot_dimension_numbers<[1], [0], [0], [1], [0, 0, 1, 1], [], []>} : vector<32x4xf32>, vector<4x32xf32>, vector<32x32xf32> -> vector<32x32xf32>
    %c0_63 = arith.constant 0 : index
    %c0_64 = arith.constant 0 : index
    %62 = vector.load %arg8[%c0_63, %c0_64] : memref<32x1xf32, #tpu.memory_space<vmem>>, vector<32x1xf32>
    %63 = vector.broadcast %62 : vector<32x1xf32> to vector<32x32xf32>
    %64 = arith.addf %61, %63 : vector<32x32xf32>
    %65 = arith.addf %54, %64 : vector<32x32xf32>
    %66 = math.tanh %65 : vector<32x32xf32>
    %67 = vector.extract_strided_slice %66 {offsets = [0, 0], sizes = [32, 16], strides = [1, 1]} : vector<32x32xf32> to vector<32x16xf32>
    %c0_65 = arith.constant 0 : index
    %c0_66 = arith.constant 0 : index
    %c0_67 = arith.constant 0 : index
    %68 = vector.load %arg9[%c0_65, %c0_66, %c0_67] : memref<2x32x16xf32, #tpu.memory_space<vmem>>, vector<1x32x16xf32>
    %69 = vector.shape_cast %68 : vector<1x32x16xf32> to vector<32x16xf32>
    %70 = vector.shape_cast %67 : vector<32x16xf32> to vector<1x32x16xf32>
    tpu.vector_store %arg9[%c0_65, %c0_66, %c0_67], %70 {strides = array<i32>} : memref<2x32x16xf32, #tpu.memory_space<vmem>>, vector<1x32x16xf32>,
    %71 = vector.extract_strided_slice %66 {offsets = [0, 16], sizes = [32, 16], strides = [1, 1]} : vector<32x32xf32> to vector<32x16xf32>
    %c1_68 = arith.constant 1 : index
    %c0_69 = arith.constant 0 : index
    %c0_70 = arith.constant 0 : index
    %72 = vector.load %arg9[%c1_68, %c0_69, %c0_70] : memref<2x32x16xf32, #tpu.memory_space<vmem>>, vector<1x32x16xf32>
    %73 = vector.shape_cast %72 : vector<1x32x16xf32> to vector<32x16xf32>
    %74 = vector.shape_cast %71 : vector<32x16xf32> to vector<1x32x16xf32>
    tpu.vector_store %arg9[%c1_68, %c0_69, %c0_70], %74 {strides = array<i32>} : memref<2x32x16xf32, #tpu.memory_space<vmem>>, vector<1x32x16xf32>,
    %c0_71 = arith.constant 0 : index
    %c0_72 = arith.constant 0 : index
    %c16 = arith.constant 16 : index
    %75 = vector.load %arg10[%c0_71, %c0_72, %c16] : memref<2x4x20xf32, #tpu.memory_space<vmem>>, vector<2x4x4xf32>
    %c0_73 = arith.constant 0 : index
    %c0_74 = arith.constant 0 : index
    %c0_75 = arith.constant 0 : index
    %76 = vector.load %arg10[%c0_73, %c0_74, %c0_75] : memref<2x4x20xf32, #tpu.memory_space<vmem>>, vector<2x4x4xf32>
    tpu.vector_store %arg10[%c0_73, %c0_74, %c0_75], %75 {strides = array<i32>} : memref<2x4x20xf32, #tpu.memory_space<vmem>>, vector<2x4x4xf32>,
    %c0_76 = arith.constant 0 : index
    %c0_77 = arith.constant 0 : index
    %c16_78 = arith.constant 16 : index
    %77 = vector.load %arg11[%c0_76, %c0_77, %c16_78] : memref<2x32x20xf32, #tpu.memory_space<vmem>>, vector<2x32x4xf32>
    %c0_79 = arith.constant 0 : index
    %c0_80 = arith.constant 0 : index
    %c0_81 = arith.constant 0 : index
    %78 = vector.load %arg11[%c0_79, %c0_80, %c0_81] : memref<2x32x20xf32, #tpu.memory_space<vmem>>, vector<2x32x4xf32>
    tpu.vector_store %arg11[%c0_79, %c0_80, %c0_81], %77 {strides = array<i32>} : memref<2x32x20xf32, #tpu.memory_space<vmem>>, vector<2x32x4xf32>,
    return
  }
  func.func @transform_0(%arg0: i32, %arg1: i32) -> (i32, i32, i32) {
    %c0_i32 = arith.constant 0 : i32
    %c0_i32_0 = arith.constant 0 : i32
    return %arg0, %c0_i32, %arg1 : i32, i32, i32
  }
  func.func @transform_1(%arg0: i32, %arg1: i32) -> (i32, i32) {
    %c0_i32 = arith.constant 0 : i32
    %c0_i32_0 = arith.constant 0 : i32
    %c0_i32_1 = arith.constant 0 : i32
    return %c0_i32, %c0_i32_0 : i32, i32
  }
  func.func @transform_2(%arg0: i32, %arg1: i32) -> (i32, i32) {
    %c0_i32 = arith.constant 0 : i32
    %c0_i32_0 = arith.constant 0 : i32
    %c0_i32_1 = arith.constant 0 : i32
    return %c0_i32, %c0_i32_0 : i32, i32
  }
  func.func @transform_3(%arg0: i32, %arg1: i32) -> (i32, i32) {
    %c0_i32 = arith.constant 0 : i32
    %c0_i32_0 = arith.constant 0 : i32
    %c0_i32_1 = arith.constant 0 : i32
    return %c0_i32, %c0_i32_0 : i32, i32
  }
  func.func @transform_4(%arg0: i32, %arg1: i32) -> (i32, i32) {
    %c0_i32 = arith.constant 0 : i32
    %c0_i32_0 = arith.constant 0 : i32
    %c0_i32_1 = arith.constant 0 : i32
    return %c0_i32, %c0_i32_0 : i32, i32
  }
  func.func @transform_5(%arg0: i32, %arg1: i32) -> (i32, i32) {
    %c0_i32 = arith.constant 0 : i32
    %c0_i32_0 = arith.constant 0 : i32
    %c0_i32_1 = arith.constant 0 : i32
    return %c0_i32, %c0_i32_0 : i32, i32
  }
  func.func @transform_6(%arg0: i32, %arg1: i32) -> (i32, i32) {
    %c0_i32 = arith.constant 0 : i32
    %c0_i32_0 = arith.constant 0 : i32
    %c0_i32_1 = arith.constant 0 : i32
    return %c0_i32, %c0_i32_0 : i32, i32
  }
  func.func @transform_7(%arg0: i32, %arg1: i32) -> (i32, i32, i32) {
    %c0_i32 = arith.constant 0 : i32
    %c0_i32_0 = arith.constant 0 : i32
    return %arg0, %c0_i32, %arg1 : i32, i32, i32
  }
}

</mosaic_0001>

<llo_original>
// kernel: tpu_custom_call.1
$region0: #{tpu_custom_call.1}
  #allocation0 [shape = 'u32[]', space=smem, size = 0x4, offset = 0x4, fixed_abs, tag = 'smem constant byte address 0x4 - core index']
  #allocation1 [shape = 'u32[144,128]{1,0:T(1,128)}', space=vmem, size = 0x12000, scoped, tag = 'internal scratch']
  #allocation2 [shape = 'f32[2,4,20]{2,1,0:T(4,128)}', space=vmem, size = 0x1000, scoped, tag = 'scratch operand']
  #allocation3 [shape = 'f32[2,32,20]{2,1,0:T(8,128)}', space=vmem, size = 0x8000, scoped, tag = 'scratch operand']
  %s0 = inlined_call_operand.vmem [shape: f32[2,4,16], index: 0, kind: input, shape index: {}]
  %s1 = inlined_call_operand.vmem [shape: f32[32,12], index: 1, kind: input, shape index: {}]
  %s2 = inlined_call_operand.vmem [shape: f32[32,1], index: 2, kind: input, shape index: {}]
  %s3 = inlined_call_operand.vmem [shape: f32[32,96], index: 3, kind: input, shape index: {}]
  %s4 = inlined_call_operand.vmem [shape: f32[32,1], index: 4, kind: input, shape index: {}]
  %s5 = inlined_call_operand.vmem [shape: f32[32,4], index: 5, kind: input, shape index: {}]
  %s6 = inlined_call_operand.vmem [shape: f32[32,1], index: 6, kind: input, shape index: {}]
  %s7 = inlined_call_operand.vmem [shape: f32[2,32,16], index: 7, kind: output, shape index: {}]
  %s8 = sld [smem:[#allocation0]]
  $region42: #{tpu_custom_call.1} parent=0
    _
  %s10 = ssub.s32 1, %s8
  %s11 = scalar_select 0, %s10, %s8
  // Predicated region
  $region2: #{tpu_custom_call.1} parent=0 // pred_check
    _
  $region3: #{tpu_custom_call.1} parent=0 // pred_check_branch
    %13 = sbr.rel (0) target = $region5
  $region4: #{tpu_custom_call.1} parent=0 // pred_region
    _
  $region5: #{tpu_custom_call.1} parent=0 // pred_fallthru
    _
  // Predicated region
  $region6: #{tpu_custom_call.1} parent=0 // pred_check
    _
  $region7: #{tpu_custom_call.1} parent=0 // pred_check_branch
    %15 = sbr.rel (0) target = $region9
  $region8: #{tpu_custom_call.1} parent=0 // pred_region
    _
  $region9: #{tpu_custom_call.1} parent=0 // pred_fallthru
    _
  // Predicated region
  $region10: #{tpu_custom_call.1} parent=0 // pred_check
    _
  $region11: #{tpu_custom_call.1} parent=0 // pred_check_branch
    %17 = sbr.rel (0) target = $region13
  $region12: #{tpu_custom_call.1} parent=0 // pred_region
    _
  $region13: #{tpu_custom_call.1} parent=0 // pred_fallthru
    _
  // Predicated region
  $region14: #{tpu_custom_call.1} parent=0 // pred_check
    _
  $region15: #{tpu_custom_call.1} parent=0 // pred_check_branch
    %19 = sbr.rel (0) target = $region17
  $region16: #{tpu_custom_call.1} parent=0 // pred_region
    _
  $region17: #{tpu_custom_call.1} parent=0 // pred_fallthru
    _
  // Predicated region
  $region18: #{tpu_custom_call.1} parent=0 // pred_check
    _
  $region19: #{tpu_custom_call.1} parent=0 // pred_check_branch
    %21 = sbr.rel (0) target = $region21
  $region20: #{tpu_custom_call.1} parent=0 // pred_region
    _
  $region21: #{tpu_custom_call.1} parent=0 // pred_fallthru
    _
  // Predicated region
  $region22: #{tpu_custom_call.1} parent=0 // pred_check
    _
  $region23: #{tpu_custom_call.1} parent=0 // pred_check_branch
    %23 = sbr.rel (0) target = $region25
  $region24: #{tpu_custom_call.1} parent=0 // pred_region
    _
  $region25: #{tpu_custom_call.1} parent=0 // pred_fallthru
    _
  // Predicated region
  $region26: #{tpu_custom_call.1} parent=0 // pred_check
    _
  $region27: #{tpu_custom_call.1} parent=0 // pred_check_branch
    %25 = sbr.rel (0) target = $region29
  $region28: #{tpu_custom_call.1} parent=0 // pred_region
    _
  $region29: #{tpu_custom_call.1} parent=0 // pred_fallthru
    _
  %p26 = scmp.eq.s32.totalorder 0, 0
  // Predicated region
  $region30: #{tpu_custom_call.1} parent=0 // pred_check
    %p27 = pneg %p26
  $region31: #{tpu_custom_call.1} parent=0 // pred_check_branch
    %29 = sbr.rel (%p27) target = $region33
  $region32: #{tpu_custom_call.1} parent=0 // pred_region
    %vm30 = vcmask 27648
    %31 = vst.msk [vmem:[#allocation2] sm:$0xf] %vm30, 0.0
    %32 = vst.msk [vmem:[#allocation2 + $0x4] sm:$0xf] %vm30, 0.0
    %vm33 = vcmask 31744
    %34 = vst.msk [vmem:[#allocation3] sm:$0xff] %vm33, 0.0
    %35 = vst.msk [vmem:[#allocation3 + $0x8] sm:$0xff] %vm33, 0.0
    %36 = vst.msk [vmem:[#allocation3 + $0x10] sm:$0xff] %vm33, 0.0
    %37 = vst.msk [vmem:[#allocation3 + $0x18] sm:$0xff] %vm33, 0.0
    %38 = vst.msk [vmem:[#allocation3 + $0x20] sm:$0xff] %vm33, 0.0
    %39 = vst.msk [vmem:[#allocation3 + $0x28] sm:$0xff] %vm33, 0.0
    %40 = vst.msk [vmem:[#allocation3 + $0x30] sm:$0xff] %vm33, 0.0
    %41 = vst.msk [vmem:[#allocation3 + $0x38] sm:$0xff] %vm33, 0.0
  $region33: #{tpu_custom_call.1} parent=0 // pred_fallthru
    _
  %v42 = vld [vmem:[%s0] sm:$0xf]
  %v43 = vld [vmem:[%s0 + $0x4] sm:$0xf]
  %46 = vrot.lane.b32.xlu0 %v42, 4
  %v47 = vpop.permute.xlu0 %46
  %48 = vrot.lane.b32.xlu0 %v43, 4
  %v49 = vpop.permute.xlu0 %48
  %vm52 = vcmask 158752
  %53 = vst.msk [vmem:[#allocation2] sm:$0xf] %vm52, %v47
  %54 = vst.msk [vmem:[#allocation2 + $0x4] sm:$0xf] %vm52, %v49
  %v55 = vld [vmem:[#allocation2] sm:$0xf]
  %v57 = vrot.slane %v55, 4
  %58 = vrot.lane.b32.xlu0 %v57, 126
  %v59 = vpop.permute.xlu0 %58
  %61 = vrot.lane.b32.xlu0 %v55, 124
  %v62 = vpop.permute.xlu0 %61
  %vm64 = vcmask 1043456
  %v65 = vsel %vm64, %v55, %v59
  %s66 = scalar_lea.vmem [#allocation2], 4
  %v67 = vld [vmem:[%s66] sm:$0xf]
  %v69 = vrot.slane %v67, 4
  %70 = vrot.lane.b32.xlu0 %v69, 126
  %v71 = vpop.permute.xlu0 %70
  %73 = vrot.lane.b32.xlu0 %v67, 124
  %v74 = vpop.permute.xlu0 %73
  %v75 = vsel %vm64, %v67, %v71
  %77 = vrot.lane.b32.xlu0 %v75, 16
  %v78 = vpop.permute.xlu0 %77
  %79 = vrot.lane.b32.xlu0 %v74, 16
  %v80 = vpop.permute.xlu0 %79
  %vm83 = vcmask 130048
  %v84 = vsel %vm83, %v65, %v78
  %v85 = vsel %vm83, %v62, %v80
  %v86 = vld [vmem:[%s1] sm:$0xff]
  %v87 = vld [vmem:[%s1 + $0x8] sm:$0xff]
  %v88 = vld [vmem:[%s1 + $0x10] sm:$0xff]
  %v89 = vld [vmem:[%s1 + $0x18] sm:$0xff]
  %v90 = vld [vmem:[%s2] sm:$0xff]
  %v91 = vld [vmem:[%s2 + $0x8] sm:$0xff]
  %v92 = vld [vmem:[%s2 + $0x10] sm:$0xff]
  %v93 = vld [vmem:[%s2 + $0x18] sm:$0xff]
  %95 = vset.pattern.permute.xlu0 0
  %96 = vperm.xlu0 %95, %v90
  %v97 = vpop.permute.xlu0 %96
  %100 = vset.pattern.permute.xlu0 0
  %101 = vperm.xlu0 %100, %v91
  %v102 = vpop.permute.xlu0 %101
  %105 = vset.pattern.permute.xlu0 0
  %106 = vperm.xlu0 %105, %v92
  %v107 = vpop.permute.xlu0 %106
  %110 = vset.pattern.permute.xlu0 0
  %111 = vperm.xlu0 %110, %v93
  %v112 = vpop.permute.xlu0 %111
  %vm114 = vcmask 97280
  %v116 = vsel %vm114, %v86, 0
  %v119 = vsel %vm114, %v87, 0
  %v122 = vsel %vm114, %v88, 0
  %v125 = vsel %vm114, %v89, 0
  %v128 = vsel %vm64, %v85, 0
  %130 = vmatprep.subr.mxu0 0.0
  %131 = vmatpush1.msra.mxu0 %v84
  %132 = vmatprep.subr.mxu0 0.0
  %133 = vmatpush1.msra.mxu0 %v128
  %134 = vmatprep.subr.mxu0 0.0
  %135 = vmatpush1.msra.mxu0 0.0
  %136 = vmatprep.subr.mxu0 0.0
  %137 = vmatpush1.msra.mxu0 0.0
  %138 = vmatprep.subr.mxu0 0.0
  %139 = vmatpush1.msra.mxu0 0.0
  %140 = vmatprep.subr.mxu0 0.0
  %141 = vmatpush1.msra.mxu0 0.0
  %142 = vmatprep.subr.mxu0 0.0
  %143 = vmatpush1.msra.mxu0 0.0
  %144 = vmatprep.subr.mxu0 0.0
  %145 = vmatpush1.msra.mxu0 0.0
  %146 = vmatprep.subr.mxu0 0.0
  %147 = vmatpush1.msra.mxu0 0.0
  %148 = vmatprep.subr.mxu0 0.0
  %149 = vmatpush1.msra.mxu0 0.0
  %150 = vmatprep.subr.mxu0 0.0
  %151 = vmatpush1.msra.mxu0 0.0
  %152 = vmatprep.subr.mxu0 0.0
  %153 = vmatpush1.msra.mxu0 0.0
  %154 = vmatprep.subr.mxu0 0.0
  %155 = vmatpush1.msra.mxu0 0.0
  %156 = vmatprep.subr.mxu0 0.0
  %157 = vmatpush1.msra.mxu0 0.0
  %158 = vmatprep.subr.mxu0 0.0
  %159 = vmatpush1.msra.mxu0 0.0
  %160 = vmatprep.subr.mxu0 0.0
  %161 = vmatpush1.msra.mxu0 0.0
  %162 = vmatprep.subr.mxu0 0.0
  %163 = vmatpush1.msra.mxu0 0.0
  %164 = vmatprep.subr.mxu0 0.0
  %165 = vmatpush1.msra.mxu0 0.0
  %166 = vmatprep.subr.mxu0 0.0
  %167 = vmatpush1.msra.mxu0 0.0
  %168 = vmatprep.subr.mxu0 0.0
  %169 = vmatpush1.msra.mxu0 0.0
  %170 = vmatprep.subr.mxu0 0.0
  %171 = vmatpush1.msra.mxu0 0.0
  %172 = vmatprep.subr.mxu0 0.0
  %173 = vmatpush1.msra.mxu0 0.0
  %174 = vmatprep.subr.mxu0 0.0
  %175 = vmatpush1.msra.mxu0 0.0
  %176 = vmatprep.subr.mxu0 0.0
  %177 = vmatpush1.msra.mxu0 0.0
  %178 = vmatprep.subr.mxu0 0.0
  %179 = vmatpush1.msra.mxu0 0.0
  %180 = vmatprep.subr.mxu0 0.0
  %181 = vmatpush1.msra.mxu0 0.0
  %182 = vmatprep.subr.mxu0 0.0
  %183 = vmatpush1.msra.mxu0 0.0
  %184 = vmatprep.subr.mxu0 0.0
  %185 = vmatpush1.msra.mxu0 0.0
  %186 = vmatprep.subr.mxu0 0.0
  %187 = vmatpush1.msra.mxu0 0.0
  %188 = vmatprep.subr.mxu0 0.0
  %189 = vmatpush1.msra.mxu0 0.0
  %190 = vmatprep.subr.mxu0 0.0
  %191 = vmatpush1.msra.mxu0 0.0
  %192 = vmatprep.subr.mxu0 0.0
  %193 = vmatpush1.msra.mxu0 0.0
  %194 = vmatprep.mubr.f32.mxu0 0.0
  %195 = vmatmul.mubr.f32.gmra.mrb[0].mxu0 %v116
  %v196 = vpop.f32.mrb[0].mxu0
  %v197 = vadd.f32 %v97, %v196
  %v198 = vpop.f32.mrb[0].mxu0
  %199 = vmatprep.mubr.f32.mxu0 0.0
  %200 = vmatmul.mubr.f32.gmra.mrb[0].mxu0 %v119
  %v201 = vpop.f32.mrb[0].mxu0
  %v202 = vadd.f32 %v102, %v201
  %v203 = vpop.f32.mrb[0].mxu0
  %204 = vmatprep.mubr.f32.mxu0 0.0
  %205 = vmatmul.mubr.f32.gmra.mrb[0].mxu0 %v122
  %v206 = vpop.f32.mrb[0].mxu0
  %v207 = vadd.f32 %v107, %v206
  %v208 = vpop.f32.mrb[0].mxu0
  %209 = vmatprep.mubr.f32.mxu0 0.0
  %210 = vmatmul.mubr.f32.gmra.mrb[0].mxu0 %v125
  %v211 = vpop.f32.mrb[0].mxu0
  %v212 = vadd.f32 %v112, %v211
  %v213 = vpop.f32.mrb[0].mxu0
  %214 = vdwg.mxu0
  %v215 = vtanh.pop %v197
  %v216 = vtanh.pop %v202
  %v217 = vtanh.pop %v207
  %v218 = vtanh.pop %v212
  %223 = vrot.lane.b32.xlu0 %v215, 4
  %v224 = vpop.permute.xlu0 %223
  %225 = vrot.lane.b32.xlu0 %v216, 4
  %v226 = vpop.permute.xlu0 %225
  %227 = vrot.lane.b32.xlu0 %v217, 4
  %v228 = vpop.permute.xlu0 %227
  %229 = vrot.lane.b32.xlu0 %v218, 4
  %v230 = vpop.permute.xlu0 %229
  %vm235 = vcmask 162848
  %236 = vst.msk [vmem:[#allocation3] sm:$0xff] %vm235, %v224
  %237 = vst.msk [vmem:[#allocation3 + $0x8] sm:$0xff] %vm235, %v226
  %238 = vst.msk [vmem:[#allocation3 + $0x10] sm:$0xff] %vm235, %v228
  %239 = vst.msk [vmem:[#allocation3 + $0x18] sm:$0xff] %vm235, %v230
  %240 = vrot.lane.b32.xlu0 %v215, 116
  %v241 = vpop.permute.xlu0 %240
  %242 = vrot.lane.b32.xlu0 %v216, 116
  %v243 = vpop.permute.xlu0 %242
  %244 = vrot.lane.b32.xlu0 %v217, 116
  %v245 = vpop.permute.xlu0 %244
  %246 = vrot.lane.b32.xlu0 %v218, 116
  %v247 = vpop.permute.xlu0 %246
  %s252 = scalar_lea.vmem [#allocation3], 32
  %253 = vst.msk [vmem:[%s252] sm:$0xff] %vm235, %v241
  %254 = vst.msk [vmem:[%s252 + $0x8] sm:$0xff] %vm235, %v243
  %255 = vst.msk [vmem:[%s252 + $0x10] sm:$0xff] %vm235, %v245
  %256 = vst.msk [vmem:[%s252 + $0x18] sm:$0xff] %vm235, %v247
  %v257 = vld [vmem:[#allocation3] sm:$0xff]
  %v258 = vld [vmem:[#allocation3 + $0x8] sm:$0xff]
  %v259 = vld [vmem:[#allocation3 + $0x10] sm:$0xff]
  %v260 = vld [vmem:[#allocation3 + $0x18] sm:$0xff]
  %265 = vrot.lane.b32.xlu0 %v257, 126
  %v266 = vpop.permute.xlu0 %265
  %267 = vrot.lane.b32.xlu0 %v258, 126
  %v268 = vpop.permute.xlu0 %267
  %269 = vrot.lane.b32.xlu0 %v259, 126
  %v270 = vpop.permute.xlu0 %269
  %271 = vrot.lane.b32.xlu0 %v260, 126
  %v272 = vpop.permute.xlu0 %271
  %277 = vrot.lane.b32.xlu0 %v257, 124
  %v278 = vpop.permute.xlu0 %277
  %279 = vrot.lane.b32.xlu0 %v258, 124
  %v280 = vpop.permute.xlu0 %279
  %281 = vrot.lane.b32.xlu0 %v259, 124
  %v282 = vpop.permute.xlu0 %281
  %283 = vrot.lane.b32.xlu0 %v260, 124
  %v284 = vpop.permute.xlu0 %283
  %v289 = vld [vmem:[%s252] sm:$0xff]
  %v290 = vld [vmem:[%s252 + $0x8] sm:$0xff]
  %v291 = vld [vmem:[%s252 + $0x10] sm:$0xff]
  %v292 = vld [vmem:[%s252 + $0x18] sm:$0xff]
  %297 = vrot.lane.b32.xlu0 %v289, 126
  %v298 = vpop.permute.xlu0 %297
  %299 = vrot.lane.b32.xlu0 %v290, 126
  %v300 = vpop.permute.xlu0 %299
  %301 = vrot.lane.b32.xlu0 %v291, 126
  %v302 = vpop.permute.xlu0 %301
  %303 = vrot.lane.b32.xlu0 %v292, 126
  %v304 = vpop.permute.xlu0 %303
  %305 = vrot.lane.b32.xlu0 %v289, 124
  %v306 = vpop.permute.xlu0 %305
  %307 = vrot.lane.b32.xlu0 %v290, 124
  %v308 = vpop.permute.xlu0 %307
  %309 = vrot.lane.b32.xlu0 %v291, 124
  %v310 = vpop.permute.xlu0 %309
  %311 = vrot.lane.b32.xlu0 %v292, 124
  %v312 = vpop.permute.xlu0 %311
  %313 = vrot.lane.b32.xlu0 %v289, 16
  %v314 = vpop.permute.xlu0 %313
  %315 = vrot.lane.b32.xlu0 %v290, 16
  %v316 = vpop.permute.xlu0 %315
  %317 = vrot.lane.b32.xlu0 %v291, 16
  %v318 = vpop.permute.xlu0 %317
  %319 = vrot.lane.b32.xlu0 %v292, 16
  %v320 = vpop.permute.xlu0 %319
  %321 = vrot.lane.b32.xlu0 %v298, 16
  %v322 = vpop.permute.xlu0 %321
  %323 = vrot.lane.b32.xlu0 %v300, 16
  %v324 = vpop.permute.xlu0 %323
  %325 = vrot.lane.b32.xlu0 %v302, 16
  %v326 = vpop.permute.xlu0 %325
  %327 = vrot.lane.b32.xlu0 %v304, 16
  %v328 = vpop.permute.xlu0 %327
  %329 = vrot.lane.b32.xlu0 %v306, 16
  %v330 = vpop.permute.xlu0 %329
  %331 = vrot.lane.b32.xlu0 %v308, 16
  %v332 = vpop.permute.xlu0 %331
  %333 = vrot.lane.b32.xlu0 %v310, 16
  %v334 = vpop.permute.xlu0 %333
  %335 = vrot.lane.b32.xlu0 %v312, 16
  %v336 = vpop.permute.xlu0 %335
  %v349 = vsel %vm83, %v257, %v314
  %v350 = vsel %vm83, %v258, %v316
  %v351 = vsel %vm83, %v259, %v318
  %v352 = vsel %vm83, %v260, %v320
  %v353 = vsel %vm83, %v266, %v322
  %v354 = vsel %vm83, %v268, %v324
  %v355 = vsel %vm83, %v270, %v326
  %v356 = vsel %vm83, %v272, %v328
  %v357 = vsel %vm83, %v278, %v330
  %v358 = vsel %vm83, %v280, %v332
  %v359 = vsel %vm83, %v282, %v334
  %v360 = vsel %vm83, %v284, %v336
  %v361 = vld [vmem:[%s3] sm:$0xff]
  %v362 = vld [vmem:[%s3 + $0x8] sm:$0xff]
  %v363 = vld [vmem:[%s3 + $0x10] sm:$0xff]
  %v364 = vld [vmem:[%s3 + $0x18] sm:$0xff]
  %v365 = vld [vmem:[%s4] sm:$0xff]
  %v366 = vld [vmem:[%s4 + $0x8] sm:$0xff]
  %v367 = vld [vmem:[%s4 + $0x10] sm:$0xff]
  %v368 = vld [vmem:[%s4 + $0x18] sm:$0xff]
  %370 = vset.pattern.permute.xlu0 0
  %371 = vperm.xlu0 %370, %v365
  %v372 = vpop.permute.xlu0 %371
  %375 = vset.pattern.permute.xlu0 0
  %376 = vperm.xlu0 %375, %v366
  %v377 = vpop.permute.xlu0 %376
  %380 = vset.pattern.permute.xlu0 0
  %381 = vperm.xlu0 %380, %v367
  %v382 = vpop.permute.xlu0 %381
  %385 = vset.pattern.permute.xlu0 0
  %386 = vperm.xlu0 %385, %v368
  %v387 = vpop.permute.xlu0 %386
  %vm389 = vcmask 785408
  %v391 = vsel %vm389, %v361, 0
  %v394 = vsel %vm389, %v362, 0
  %v397 = vsel %vm389, %v363, 0
  %v400 = vsel %vm389, %v364, 0
  %402 = vmatprep.subr.mxu0 0.0
  %403 = vmatpush1.msra.mxu0 %v349
  %404 = vmatprep.subr.mxu0 0.0
  %405 = vmatpush1.msra.mxu0 %v350
  %406 = vmatprep.subr.mxu0 0.0
  %407 = vmatpush1.msra.mxu0 %v351
  %408 = vmatprep.subr.mxu0 0.0
  %409 = vmatpush1.msra.mxu0 %v352
  %410 = vmatprep.subr.mxu0 0.0
  %411 = vmatpush1.msra.mxu0 %v353
  %412 = vmatprep.subr.mxu0 0.0
  %413 = vmatpush1.msra.mxu0 %v354
  %414 = vmatprep.subr.mxu0 0.0
  %415 = vmatpush1.msra.mxu0 %v355
  %416 = vmatprep.subr.mxu0 0.0
  %417 = vmatpush1.msra.mxu0 %v356
  %418 = vmatprep.subr.mxu0 0.0
  %419 = vmatpush1.msra.mxu0 %v357
  %420 = vmatprep.subr.mxu0 0.0
  %421 = vmatpush1.msra.mxu0 %v358
  %422 = vmatprep.subr.mxu0 0.0
  %423 = vmatpush1.msra.mxu0 %v359
  %424 = vmatprep.subr.mxu0 0.0
  %425 = vmatpush1.msra.mxu0 %v360
  %426 = vmatprep.subr.mxu0 0.0
  %427 = vmatpush1.msra.mxu0 0.0
  %428 = vmatprep.subr.mxu0 0.0
  %429 = vmatpush1.msra.mxu0 0.0
  %430 = vmatprep.subr.mxu0 0.0
  %431 = vmatpush1.msra.mxu0 0.0
  %432 = vmatprep.subr.mxu0 0.0
  %433 = vmatpush1.msra.mxu0 0.0
  %434 = vmatprep.subr.mxu0 0.0
  %435 = vmatpush1.msra.mxu0 0.0
  %436 = vmatprep.subr.mxu0 0.0
  %437 = vmatpush1.msra.mxu0 0.0
  %438 = vmatprep.subr.mxu0 0.0
  %439 = vmatpush1.msra.mxu0 0.0
  %440 = vmatprep.subr.mxu0 0.0
  %441 = vmatpush1.msra.mxu0 0.0
  %442 = vmatprep.subr.mxu0 0.0
  %443 = vmatpush1.msra.mxu0 0.0
  %444 = vmatprep.subr.mxu0 0.0
  %445 = vmatpush1.msra.mxu0 0.0
  %446 = vmatprep.subr.mxu0 0.0
  %447 = vmatpush1.msra.mxu0 0.0
  %448 = vmatprep.subr.mxu0 0.0
  %449 = vmatpush1.msra.mxu0 0.0
  %450 = vmatprep.subr.mxu0 0.0
  %451 = vmatpush1.msra.mxu0 0.0
  %452 = vmatprep.subr.mxu0 0.0
  %453 = vmatpush1.msra.mxu0 0.0
  %454 = vmatprep.subr.mxu0 0.0
  %455 = vmatpush1.msra.mxu0 0.0
  %456 = vmatprep.subr.mxu0 0.0
  %457 = vmatpush1.msra.mxu0 0.0
  %458 = vmatprep.subr.mxu0 0.0
  %459 = vmatpush1.msra.mxu0 0.0
  %460 = vmatprep.subr.mxu0 0.0
  %461 = vmatpush1.msra.mxu0 0.0
  %462 = vmatprep.subr.mxu0 0.0
  %463 = vmatpush1.msra.mxu0 0.0
  %464 = vmatprep.subr.mxu0 0.0
  %465 = vmatpush1.msra.mxu0 0.0
  %466 = vmatprep.mubr.f32.mxu0 0.0
  %467 = vmatmul.mubr.f32.gmra.mrb[0].mxu0 %v391
  %v468 = vpop.f32.mrb[0].mxu0
  %v469 = vadd.f32 %v372, %v468
  %v470 = vpop.f32.mrb[0].mxu0
  %471 = vmatprep.mubr.f32.mxu0 0.0
  %472 = vmatmul.mubr.f32.gmra.mrb[0].mxu0 %v394
  %v473 = vpop.f32.mrb[0].mxu0
  %v474 = vadd.f32 %v377, %v473
  %v475 = vpop.f32.mrb[0].mxu0
  %476 = vmatprep.mubr.f32.mxu0 0.0
  %477 = vmatmul.mubr.f32.gmra.mrb[0].mxu0 %v397
  %v478 = vpop.f32.mrb[0].mxu0
  %v479 = vadd.f32 %v382, %v478
  %v480 = vpop.f32.mrb[0].mxu0
  %481 = vmatprep.mubr.f32.mxu0 0.0
  %482 = vmatmul.mubr.f32.gmra.mrb[0].mxu0 %v400
  %v483 = vpop.f32.mrb[0].mxu0
  %v484 = vadd.f32 %v387, %v483
  %v485 = vpop.f32.mrb[0].mxu0
  %486 = vdwg.mxu0
  %v487 = vtanh.pop %v469
  %v488 = vtanh.pop %v474
  %v489 = vtanh.pop %v479
  %v490 = vtanh.pop %v484
  %v491 = vld [vmem:[%s0] sm:$0xf]
  %s492 = scalar_lea.vmem %s0, 4
  %v493 = vld [vmem:[%s492] sm:$0xf]
  %495 = vrot.lane.b32.xlu0 %v493, 16
  %v496 = vpop.permute.xlu0 %495
  %v498 = vsel %vm83, %v491, %v496
  %v499 = vld [vmem:[%s5] sm:$0xff]
  %v500 = vld [vmem:[%s5 + $0x8] sm:$0xff]
  %v501 = vld [vmem:[%s5 + $0x10] sm:$0xff]
  %v502 = vld [vmem:[%s5 + $0x18] sm:$0xff]
  %v503 = vld [vmem:[%s6] sm:$0xff]
  %v504 = vld [vmem:[%s6 + $0x8] sm:$0xff]
  %v505 = vld [vmem:[%s6 + $0x10] sm:$0xff]
  %v506 = vld [vmem:[%s6 + $0x18] sm:$0xff]
  %508 = vset.pattern.permute.xlu0 0
  %509 = vperm.xlu0 %508, %v503
  %v510 = vpop.permute.xlu0 %509
  %513 = vset.pattern.permute.xlu0 0
  %514 = vperm.xlu0 %513, %v504
  %v515 = vpop.permute.xlu0 %514
  %518 = vset.pattern.permute.xlu0 0
  %519 = vperm.xlu0 %518, %v505
  %v520 = vpop.permute.xlu0 %519
  %523 = vset.pattern.permute.xlu0 0
  %524 = vperm.xlu0 %523, %v506
  %v525 = vpop.permute.xlu0 %524
  %vm527 = vcmask 31744
  %v529 = vsel %vm527, %v499, 0
  %v532 = vsel %vm527, %v500, 0
  %v535 = vsel %vm527, %v501, 0
  %v538 = vsel %vm527, %v502, 0
  %v541 = vsel %vm64, %v498, 0
  %543 = vmatprep.subr.mxu0 0.0
  %544 = vmatpush1.msra.mxu0 %v541
  %545 = vmatprep.subr.mxu0 0.0
  %546 = vmatpush1.msra.mxu0 0.0
  %547 = vmatprep.subr.mxu0 0.0
  %548 = vmatpush1.msra.mxu0 0.0
  %549 = vmatprep.subr.mxu0 0.0
  %550 = vmatpush1.msra.mxu0 0.0
  %551 = vmatprep.subr.mxu0 0.0
  %552 = vmatpush1.msra.mxu0 0.0
  %553 = vmatprep.subr.mxu0 0.0
  %554 = vmatpush1.msra.mxu0 0.0
  %555 = vmatprep.subr.mxu0 0.0
  %556 = vmatpush1.msra.mxu0 0.0
  %557 = vmatprep.subr.mxu0 0.0
  %558 = vmatpush1.msra.mxu0 0.0
  %559 = vmatprep.subr.mxu0 0.0
  %560 = vmatpush1.msra.mxu0 0.0
  %561 = vmatprep.subr.mxu0 0.0
  %562 = vmatpush1.msra.mxu0 0.0
  %563 = vmatprep.subr.mxu0 0.0
  %564 = vmatpush1.msra.mxu0 0.0
  %565 = vmatprep.subr.mxu0 0.0
  %566 = vmatpush1.msra.mxu0 0.0
  %567 = vmatprep.subr.mxu0 0.0
  %568 = vmatpush1.msra.mxu0 0.0
  %569 = vmatprep.subr.mxu0 0.0
  %570 = vmatpush1.msra.mxu0 0.0
  %571 = vmatprep.subr.mxu0 0.0
  %572 = vmatpush1.msra.mxu0 0.0
  %573 = vmatprep.subr.mxu0 0.0
  %574 = vmatpush1.msra.mxu0 0.0
  %575 = vmatprep.subr.mxu0 0.0
  %576 = vmatpush1.msra.mxu0 0.0
  %577 = vmatprep.subr.mxu0 0.0
  %578 = vmatpush1.msra.mxu0 0.0
  %579 = vmatprep.subr.mxu0 0.0
  %580 = vmatpush1.msra.mxu0 0.0
  %581 = vmatprep.subr.mxu0 0.0
  %582 = vmatpush1.msra.mxu0 0.0
  %583 = vmatprep.subr.mxu0 0.0
  %584 = vmatpush1.msra.mxu0 0.0
  %585 = vmatprep.subr.mxu0 0.0
  %586 = vmatpush1.msra.mxu0 0.0
  %587 = vmatprep.subr.mxu0 0.0
  %588 = vmatpush1.msra.mxu0 0.0
  %589 = vmatprep.subr.mxu0 0.0
  %590 = vmatpush1.msra.mxu0 0.0
  %591 = vmatprep.subr.mxu0 0.0
  %592 = vmatpush1.msra.mxu0 0.0
  %593 = vmatprep.subr.mxu0 0.0
  %594 = vmatpush1.msra.mxu0 0.0
  %595 = vmatprep.subr.mxu0 0.0
  %596 = vmatpush1.msra.mxu0 0.0
  %597 = vmatprep.subr.mxu0 0.0
  %598 = vmatpush1.msra.mxu0 0.0
  %599 = vmatprep.subr.mxu0 0.0
  %600 = vmatpush1.msra.mxu0 0.0
  %601 = vmatprep.subr.mxu0 0.0
  %602 = vmatpush1.msra.mxu0 0.0
  %603 = vmatprep.subr.mxu0 0.0
  %604 = vmatpush1.msra.mxu0 0.0
  %605 = vmatprep.subr.mxu0 0.0
  %606 = vmatpush1.msra.mxu0 0.0
  %607 = vmatprep.mubr.f32.mxu0 0.0
  %608 = vmatmul.mubr.f32.gmra.mrb[0].mxu0 %v529
  %v609 = vpop.f32.mrb[0].mxu0
  %v610 = vadd.f32 %v510, %v609
  %v611 = vpop.f32.mrb[0].mxu0
  %612 = vmatprep.mubr.f32.mxu0 0.0
  %613 = vmatmul.mubr.f32.gmra.mrb[0].mxu0 %v532
  %v614 = vpop.f32.mrb[0].mxu0
  %v615 = vadd.f32 %v515, %v614
  %v616 = vpop.f32.mrb[0].mxu0
  %617 = vmatprep.mubr.f32.mxu0 0.0
  %618 = vmatmul.mubr.f32.gmra.mrb[0].mxu0 %v535
  %v619 = vpop.f32.mrb[0].mxu0
  %v620 = vadd.f32 %v520, %v619
  %v621 = vpop.f32.mrb[0].mxu0
  %622 = vmatprep.mubr.f32.mxu0 0.0
  %623 = vmatmul.mubr.f32.gmra.mrb[0].mxu0 %v538
  %v624 = vpop.f32.mrb[0].mxu0
  %v625 = vadd.f32 %v525, %v624
  %v626 = vpop.f32.mrb[0].mxu0
  %627 = vdwg.mxu0
  %v628 = vadd.f32 %v487, %v610
  %v629 = vadd.f32 %v488, %v615
  %v630 = vadd.f32 %v489, %v620
  %v631 = vadd.f32 %v490, %v625
  %v632 = vtanh.pop %v628
  %v633 = vtanh.pop %v629
  %v634 = vtanh.pop %v630
  %v635 = vtanh.pop %v631
  %636 = vst.msk [vmem:[%s7] sm:$0xff] %vm83, %v632
  %637 = vst.msk [vmem:[%s7 + $0x8] sm:$0xff] %vm83, %v633
  %638 = vst.msk [vmem:[%s7 + $0x10] sm:$0xff] %vm83, %v634
  %639 = vst.msk [vmem:[%s7 + $0x18] sm:$0xff] %vm83, %v635
  %644 = vrot.lane.b32.xlu0 %v632, 112
  %v645 = vpop.permute.xlu0 %644
  %646 = vrot.lane.b32.xlu0 %v633, 112
  %v647 = vpop.permute.xlu0 %646
  %648 = vrot.lane.b32.xlu0 %v634, 112
  %v649 = vpop.permute.xlu0 %648
  %650 = vrot.lane.b32.xlu0 %v635, 112
  %v651 = vpop.permute.xlu0 %650
  %s656 = scalar_lea.vmem %s7, 32
  %657 = vst.msk [vmem:[%s656] sm:$0xff] %vm83, %v645
  %658 = vst.msk [vmem:[%s656 + $0x8] sm:$0xff] %vm83, %v647
  %659 = vst.msk [vmem:[%s656 + $0x10] sm:$0xff] %vm83, %v649
  %660 = vst.msk [vmem:[%s656 + $0x18] sm:$0xff] %vm83, %v651
  %v661 = vld [vmem:[#allocation2] sm:$0xf]
  %v662 = vld [vmem:[#allocation2 + $0x4] sm:$0xf]
  %665 = vrot.lane.b32.xlu0 %v661, 112
  %v666 = vpop.permute.xlu0 %665
  %667 = vrot.lane.b32.xlu0 %v662, 112
  %v668 = vpop.permute.xlu0 %667
  %vm671 = vcmask 27648
  %672 = vst.msk [vmem:[#allocation2] sm:$0xf] %vm671, %v666
  %673 = vst.msk [vmem:[#allocation2 + $0x4] sm:$0xf] %vm671, %v668
  %v674 = vld [vmem:[#allocation3] sm:$0xff]
  %v675 = vld [vmem:[#allocation3 + $0x8] sm:$0xff]
  %v676 = vld [vmem:[#allocation3 + $0x10] sm:$0xff]
  %v677 = vld [vmem:[#allocation3 + $0x18] sm:$0xff]
  %v678 = vld [vmem:[#allocation3 + $0x20] sm:$0xff]
  %v679 = vld [vmem:[#allocation3 + $0x28] sm:$0xff]
  %v680 = vld [vmem:[#allocation3 + $0x30] sm:$0xff]
  %v681 = vld [vmem:[#allocation3 + $0x38] sm:$0xff]
  %690 = vrot.lane.b32.xlu0 %v674, 112
  %v691 = vpop.permute.xlu0 %690
  %692 = vrot.lane.b32.xlu0 %v675, 112
  %v693 = vpop.permute.xlu0 %692
  %694 = vrot.lane.b32.xlu0 %v676, 112
  %v695 = vpop.permute.xlu0 %694
  %696 = vrot.lane.b32.xlu0 %v677, 112
  %v697 = vpop.permute.xlu0 %696
  %698 = vrot.lane.b32.xlu0 %v678, 112
  %v699 = vpop.permute.xlu0 %698
  %700 = vrot.lane.b32.xlu0 %v679, 112
  %v701 = vpop.permute.xlu0 %700
  %702 = vrot.lane.b32.xlu0 %v680, 112
  %v703 = vpop.permute.xlu0 %702
  %704 = vrot.lane.b32.xlu0 %v681, 112
  %v705 = vpop.permute.xlu0 %704
  %714 = vst.msk [vmem:[#allocation3] sm:$0xff] %vm527, %v691
  %715 = vst.msk [vmem:[#allocation3 + $0x8] sm:$0xff] %vm527, %v693
  %716 = vst.msk [vmem:[#allocation3 + $0x10] sm:$0xff] %vm527, %v695
  %717 = vst.msk [vmem:[#allocation3 + $0x18] sm:$0xff] %vm527, %v697
  %718 = vst.msk [vmem:[#allocation3 + $0x20] sm:$0xff] %vm527, %v699
  %719 = vst.msk [vmem:[#allocation3 + $0x28] sm:$0xff] %vm527, %v701
  %720 = vst.msk [vmem:[#allocation3 + $0x30] sm:$0xff] %vm527, %v703
  %721 = vst.msk [vmem:[#allocation3 + $0x38] sm:$0xff] %vm527, %v705
  // Predicated region
  $region34: #{tpu_custom_call.1} parent=0 // pred_check
    _
  $region35: #{tpu_custom_call.1} parent=0 // pred_check_branch
    %723 = sbr.rel (0) target = $region37
  $region36: #{tpu_custom_call.1} parent=0 // pred_region
    _
  $region37: #{tpu_custom_call.1} parent=0 // pred_fallthru
    _
  // Predicated region
  $region38: #{tpu_custom_call.1} parent=0 // pred_check
    _
  $region39: #{tpu_custom_call.1} parent=0 // pred_check_branch
    %725 = sbr.rel (0) target = $region41
  $region40: #{tpu_custom_call.1} parent=0 // pred_region
    _
  $region41: #{tpu_custom_call.1} parent=0 // pred_fallthru
    _

</llo_original>
